<compile_context>
chip_gen: v6e
topology: v6e:2x2x1
jax: 0.10.0
libtpu: 0.0.40
codegen_flags: <defaults>
</compile_context>

<pallas_src>
import functools

import jax
import jax.numpy as jnp
from jax import lax
from jax.experimental import pallas as pl
from jax.experimental.pallas import tpu as pltpu

EPS = 1e-5


def _round_up(a, b):
    return (a + b - 1) // b * b


def _vmem_capacity_bytes():
    try:
        return int(pltpu.get_tpu_info().vmem_capacity_bytes)
    except Exception:
        return 64 << 20  # conservative fallback = v7x per-TensorCore VMEM


# --------------------------- tiled-path kernels ((C, tm) tiles) ---------------------------

def _stats1_kernel(x_ref, xsum_ref, gram_ref):
    """Pass A: accumulate per-channel sum of x and the Cin x Cin Gram x @ x.T."""
    @pl.when(jnp.logical_and(pl.program_id(0) == 0, pl.program_id(1) == 0))
    def _():
        xsum_ref[...] = jnp.zeros_like(xsum_ref)
        gram_ref[...] = jnp.zeros_like(gram_ref)

    x = x_ref[...]                                              # (Cin, tm)
    xsum_ref[...] += jnp.sum(x, axis=1, keepdims=True)
    gram_ref[...] += lax.dot_general(x, x, (((1,), (1,)), ((), ())),
                                     preferred_element_type=jnp.float32)


def _stats2_kernel(x_ref, w1_ref, s1_ref, t1_ref, rsum_ref, gram2_ref):
    """Pass B: recompute r = relu(bn1(W1 x)), accumulate r-sum and Gram r @ r.T."""
    @pl.when(jnp.logical_and(pl.program_id(0) == 0, pl.program_id(1) == 0))
    def _():
        rsum_ref[...] = jnp.zeros_like(rsum_ref)
        gram2_ref[...] = jnp.zeros_like(gram2_ref)

    h = jnp.dot(w1_ref[...], x_ref[...], preferred_element_type=jnp.float32)   # (Ch, tm)
    r = jnp.maximum(h * s1_ref[...] + t1_ref[...], 0.0)
    rsum_ref[...] += jnp.sum(r, axis=1, keepdims=True)
    gram2_ref[...] += lax.dot_general(r, r, (((1,), (1,)), ((), ())),
                                      preferred_element_type=jnp.float32)


def _apply_kernel(x_ref, w1_ref, s1_ref, t1_ref, w2_ref, s2_ref, t2_ref, o_ref):
    """Pass C: full conv1+bn1+relu+conv2+bn2+relu; write one lane-dense output tile."""
    h = jnp.dot(w1_ref[...], x_ref[...], preferred_element_type=jnp.float32)   # (Ch, tm)
    r = jnp.maximum(h * s1_ref[...] + t1_ref[...], 0.0)
    y = jnp.dot(w2_ref[...], r, preferred_element_type=jnp.float32)            # (Cin, tm)
    o_ref[...] = jnp.maximum(y * s2_ref[...] + t2_ref[...], 0.0)


# ------------------------------- fused single-pass kernel ---------------------------------

def _fused_kernel(x_ref, w1_ref, g1_ref, b1_ref, w2_ref, g2_ref, b2_ref, o_ref,
                  *, n_batch, m_true):
    """Whole problem in VMEM: one HBM read of x, one write of out, both BN stats in-reg."""
    w1 = w1_ref[...]
    w2 = w2_ref[...]
    inv_m = 1.0 / m_true

    hs = [jnp.dot(w1, x_ref[n], preferred_element_type=jnp.float32)
          for n in range(n_batch)]                                             # (Ch, HW) each
    hsum = sum(jnp.sum(h, axis=1, keepdims=True) for h in hs)
    hsq = sum(jnp.sum(h * h, axis=1, keepdims=True) for h in hs)
    mean1 = hsum * inv_m
    var1 = jnp.maximum(hsq * inv_m - mean1 * mean1, 0.0)
    s1 = g1_ref[...] * lax.rsqrt(var1 + EPS)
    t1 = b1_ref[...] - mean1 * s1

    ys = [jnp.dot(w2, jnp.maximum(h * s1 + t1, 0.0), preferred_element_type=jnp.float32)
          for h in hs]                                                          # (Cin, HW) each
    ysum = sum(jnp.sum(y, axis=1, keepdims=True) for y in ys)
    ysq = sum(jnp.sum(y * y, axis=1, keepdims=True) for y in ys)
    mean2 = ysum * inv_m
    var2 = jnp.maximum(ysq * inv_m - mean2 * mean2, 0.0)
    s2 = g2_ref[...] * lax.rsqrt(var2 + EPS)
    t2 = b2_ref[...] - mean2 * s2

    for n in range(n_batch):
        o_ref[n] = jnp.maximum(ys[n] * s2 + t2, 0.0)


# ----------------------------------------- wrapper ----------------------------------------

def adapter4_forward(x_nchw, w1, g1, b1, w2, g2, b2, *, tile_m=None, allow_fused=True):
    """x_nchw: (N, Cin, H, W) f32.  w1: (Ch, Cin[,1,1]), w2: (Cin, Ch[,1,1]) 1x1-conv weights."""
    N, Cin, H, W = x_nchw.shape
    w1 = jnp.asarray(w1, jnp.float32).reshape(w1.shape[0], -1)
    w2 = jnp.asarray(w2, jnp.float32).reshape(w2.shape[0], -1)
    Ch = w1.shape[0]
    HW = H * W
    M = N * HW

    g1c = g1.reshape(Ch, 1).astype(jnp.float32)
    b1c = b1.reshape(Ch, 1).astype(jnp.float32)
    g2c = g2.reshape(Cin, 1).astype(jnp.float32)
    b2c = b2.reshape(Cin, 1).astype(jnp.float32)

    x3 = x_nchw.astype(jnp.float32).reshape(N, Cin, HW)        # free reshape, no transpose

    # ---- generation-aware VMEM budgeting (v5e/v6e: 128 MiB, v7x: 64 MiB per TC) ----
    vmem_cap = _vmem_capacity_bytes()
    vmem_limit = int(min(vmem_cap - (8 << 20), 100 << 20))
    # pass-C worst case bytes per lane column: x & out double-buffered + h,r + y.
    bytes_per_lane = 4 * (4 * Cin + 2 * Ch + Cin)
    auto_cap = max(((vmem_limit * 3 // 4) // bytes_per_lane) // 128 * 128, 512)
    tm_target = auto_cap if tile_m is None else max(min(int(tile_m), auto_cap), 128)
    tm_target = max(tm_target // 128 * 128, 128)

    # ---- fused fast path: everything fits in VMEM -> 1 HBM read + 1 write total ----
    fused_need = 4 * N * HW * (3 * Cin + 2 * Ch)
    if allow_fused and N <= 32 and fused_need <= min(vmem_limit // 2, 32 << 20):
        out3 = pl.pallas_call(
            functools.partial(_fused_kernel, n_batch=N, m_true=float(M)),
            out_shape=jax.ShapeDtypeStruct((N, Cin, HW), jnp.float32),
            compiler_params=pltpu.CompilerParams(vmem_limit_bytes=vmem_limit),
        )(x3, w1, g1c, b1c, w2, g2c, b2c)
        return out3.reshape(N, Cin, H, W)

    # ---- tiled streaming path ----
    # Choose the lane tile: either a multiple-of-128 divisor of HW (no padding), the whole
    # row (HW itself, allowed as a full-dim block), or -- only for large ragged HW -- pad HW
    # up to a multiple of 128 and correct the statistics analytically below.
    if HW % 128 == 0 or HW <= tm_target:
        hw_pad = HW
    else:
        hw_pad = _round_up(HW, 128)

    if hw_pad % 128 == 0:
        k = hw_pad // 128
        d = 1
        for cand in range(min(k, max(tm_target // 128, 1)), 0, -1):
            if k % cand == 0:
                d = cand
                break
        tm = 128 * d
    else:
        tm = hw_pad                                            # full-row block (ragged, small)

    if hw_pad != HW:
        x3 = jnp.pad(x3, ((0, 0), (0, 0), (0, hw_pad - HW)))   # rare path; pads with zeros

    grid = (N, hw_pad // tm)
    Mp = N * hw_pad
    inv_m = 1.0 / M

    x_spec = pl.BlockSpec((None, Cin, tm), lambda n, m: (n, 0, m))

    def resident(shape):  # tiny weights / scale / shift: DMA'd once, stay in VMEM
        return pl.BlockSpec(shape, lambda n, m: (0,) * len(shape))

    cp_stats = pltpu.CompilerParams(dimension_semantics=("arbitrary", "arbitrary"),
                                    vmem_limit_bytes=vmem_limit)
    cp_apply = pltpu.CompilerParams(dimension_semantics=("parallel", "parallel"),
                                    vmem_limit_bytes=vmem_limit)

    # ---- pass A: x-sum and Gram of x; bn1 stats derived via W1 G1 W1^T ----
    xsum, gram1 = pl.pallas_call(
        _stats1_kernel,
        out_shape=(jax.ShapeDtypeStruct((Cin, 1), jnp.float32),
                   jax.ShapeDtypeStruct((Cin, Cin), jnp.float32)),
        grid=grid,
        in_specs=[x_spec],
        out_specs=(resident((Cin, 1)), resident((Cin, Cin))),
        compiler_params=cp_stats,
        cost_estimate=pl.CostEstimate(flops=2 * Mp * Cin * Cin + Mp * Cin,
                                      transcendentals=0,
                                      bytes_accessed=4 * Mp * Cin),
    )(x3)

    mean1 = jnp.dot(w1, xsum) * inv_m
    eh2 = jnp.sum(jnp.dot(w1, gram1) * w1, axis=1, keepdims=True) * inv_m
    var1 = jnp.maximum(eh2 - mean1 * mean1, 0.0)               # biased variance (training BN)
    s1 = g1c * lax.rsqrt(var1 + EPS)                           # fold BN1 into scale/shift
    t1 = b1c - mean1 * s1

    # ---- pass B: r-sum and Gram of r = relu(bn1(W1 x)); bn2 stats via W2 G2 W2^T ----
    rsum, gram2 = pl.pallas_call(
        _stats2_kernel,
        out_shape=(jax.ShapeDtypeStruct((Ch, 1), jnp.float32),
                   jax.ShapeDtypeStruct((Ch, Ch), jnp.float32)),
        grid=grid,
        in_specs=[x_spec, resident((Ch, Cin)), resident((Ch, 1)), resident((Ch, 1))],
        out_specs=(resident((Ch, 1)), resident((Ch, Ch))),
        compiler_params=cp_stats,
        cost_estimate=pl.CostEstimate(flops=2 * Mp * Ch * (Cin + Ch) + 4 * Mp * Ch,
                                      transcendentals=0,
                                      bytes_accessed=4 * Mp * Cin),
    )(x3, w1, s1, t1)

    if hw_pad != HW:
        # Every zero-padded column produced r_pad = relu(t1); remove its contribution
        # analytically instead of masking every tile in-kernel.
        npad = float(N * (hw_pad - HW))
        r_pad = jnp.maximum(t1, 0.0)
        rsum = rsum - npad * r_pad
        gram2 = gram2 - npad * (r_pad * r_pad.T)

    mean2 = jnp.dot(w2, rsum) * inv_m
    ey2 = jnp.sum(jnp.dot(w2, gram2) * w2, axis=1, keepdims=True) * inv_m
    var2 = jnp.maximum(ey2 - mean2 * mean2, 0.0)
    s2 = g2c * lax.rsqrt(var2 + EPS)                           # fold BN2 into scale/shift
    t2 = b2c - mean2 * s2

    # ---- pass C: apply the full pipeline, write lane-dense (N, Cin, HW) tiles ----
    out3 = pl.pallas_call(
        _apply_kernel,
        out_shape=jax.ShapeDtypeStruct((N, Cin, hw_pad), jnp.float32),
        grid=grid,
        in_specs=[x_spec, resident((Ch, Cin)), resident((Ch, 1)), resident((Ch, 1)),
                  resident((Cin, Ch)), resident((Cin, 1)), resident((Cin, 1))],
        out_specs=pl.BlockSpec((None, Cin, tm), lambda n, m: (n, 0, m)),
        compiler_params=cp_apply,
        cost_estimate=pl.CostEstimate(flops=4 * Mp * Ch * Cin + 3 * Mp * (Ch + Cin),
                                      transcendentals=0,
                                      bytes_accessed=8 * Mp * Cin),
    )(x3, w1, s1, t1, w2, s2, t2)

    if hw_pad != HW:
        out3 = out3[..., :HW]
    return out3.reshape(N, Cin, H, W)


def reference_forward(x_nchw, w1, g1, b1, w2, g2, b2):
    """Pure-JAX reference matching PyTorch Adapter4.forward in training mode."""
    def bn(y, g, b):  # y: (N, C, H, W)
        mean = jnp.mean(y, axis=(0, 2, 3), keepdims=True)
        var = jnp.mean((y - mean) ** 2, axis=(0, 2, 3), keepdims=True)
        return (y - mean) / jnp.sqrt(var + EPS) * g[None, :, None, None] + b[None, :, None, None]

    h = jnp.einsum('nchw,oc->nohw', x_nchw, w1)
    h = jnp.maximum(bn(h, g1, b1), 0.0)
    y = jnp.einsum('nchw,oc->nohw', h, w2)
    return jnp.maximum(bn(y, g2, b2), 0.0)


if __name__ == "__main__":
    N, Cin, Ch, H, W = 2, 8, 16, 16, 16

    key = jax.random.PRNGKey(0)
    kx, kw1, kw2, kg1, kb1, kg2, kb2 = jax.random.split(key, 7)

    x = jax.random.normal(kx, (N, Cin, H, W), dtype=jnp.float32)
    # Conv2d 1x1 weights with spatial dims squeezed: (Cout, Cin).
    w1 = jax.random.normal(kw1, (Ch, Cin), dtype=jnp.float32) * 0.1
    w2 = jax.random.normal(kw2, (Cin, Ch), dtype=jnp.float32) * 0.1
    # Non-trivial BatchNorm affine params to exercise the full BN math.
    g1 = 1.0 + 0.1 * jax.random.normal(kg1, (Ch,), dtype=jnp.float32)
    b1 = 0.1 * jax.random.normal(kb1, (Ch,), dtype=jnp.float32)
    g2 = 1.0 + 0.1 * jax.random.normal(kg2, (Cin,), dtype=jnp.float32)
    b2 = 0.1 * jax.random.normal(kb2, (Cin,), dtype=jnp.float32)

    ref = reference_forward(x, w1, g1, b1, w2, g2, b2)

    # 1) Default dispatch: whole problem fits in VMEM -> single fused kernel (1 read + 1 write).
    out_fused = jax.jit(adapter4_forward)(x, w1, g1, b1, w2, g2, b2)
    jax.block_until_ready(out_fused)
    assert out_fused.shape == (N, Cin, H, W)
    assert jnp.allclose(out_fused, ref, atol=1e-4, rtol=1e-4), "fused path mismatch"

    # 2) Force the tiled 3-pass streaming path with a multi-tile grid (HW=256 -> 2x128 tiles).
    fwd_tiled = jax.jit(functools.partial(adapter4_forward, tile_m=128, allow_fused=False))
    out_tiled = fwd_tiled(x, w1, g1, b1, w2, g2, b2)
    jax.block_until_ready(out_tiled)
    assert jnp.allclose(out_tiled, ref, atol=1e-4, rtol=1e-4), "tiled path mismatch"

    # 3) Ragged spatial size (H*W = 169, not a multiple of 128) on the tiled path:
    #    exercises lane padding + the analytic stats correction for padded columns.
    Hr = Wr = 13
    xr = jax.random.normal(kx, (N, Cin, Hr, Wr), dtype=jnp.float32)
    ref_r = reference_forward(xr, w1, g1, b1, w2, g2, b2)
    out_r = jax.jit(functools.partial(adapter4_forward, tile_m=128, allow_fused=False))(
        xr, w1, g1, b1, w2, g2, b2)
    jax.block_until_ready(out_r)
    assert out_r.shape == (N, Cin, Hr, Wr)
    assert jnp.allclose(out_r, ref_r, atol=1e-4, rtol=1e-4), "ragged/tiled path mismatch"

    print("KERNEL_OK")
</pallas_src>

<mosaic_0001>
module attributes {stable_mosaic.version = 11 : i64} {
  func.func @_fused_kernel(%arg0: memref<2x8x256xf32, #tpu.memory_space<vmem>>, %arg1: memref<16x8xf32, #tpu.memory_space<vmem>>, %arg2: memref<16x1xf32, #tpu.memory_space<vmem>>, %arg3: memref<16x1xf32, #tpu.memory_space<vmem>>, %arg4: memref<8x16xf32, #tpu.memory_space<vmem>>, %arg5: memref<8x1xf32, #tpu.memory_space<vmem>>, %arg6: memref<8x1xf32, #tpu.memory_space<vmem>>, %arg7: memref<2x8x256xf32, #tpu.memory_space<vmem>>) attributes {dimension_semantics = [], scalar_prefetch = 0 : i64, scratch_operands = 0 : i64, tpu.core_type = #tpu.core_type<tc>} {
    %c0 = arith.constant 0 : index
    %c0_0 = arith.constant 0 : index
    %0 = vector.load %arg1[%c0, %c0_0] : memref<16x8xf32, #tpu.memory_space<vmem>>, vector<16x8xf32>
    %c0_1 = arith.constant 0 : index
    %c0_2 = arith.constant 0 : index
    %1 = vector.load %arg4[%c0_1, %c0_2] : memref<8x16xf32, #tpu.memory_space<vmem>>, vector<8x16xf32>
    %c0_3 = arith.constant 0 : index
    %c0_4 = arith.constant 0 : index
    %c0_5 = arith.constant 0 : index
    %2 = vector.load %arg0[%c0_3, %c0_4, %c0_5] : memref<2x8x256xf32, #tpu.memory_space<vmem>>, vector<1x8x256xf32>
    %3 = vector.shape_cast %2 : vector<1x8x256xf32> to vector<8x256xf32>
    %cst = arith.constant dense<0.000000e+00> : vector<16x256xf32>
    %4 = tpu.matmul %0, %3, %cst {dimension_numbers = #tpu.dot_dimension_numbers<[1], [0], [0], [1], [0, 0, 1, 1], [], []>} : vector<16x8xf32>, vector<8x256xf32>, vector<16x256xf32> -> vector<16x256xf32>
    %c1 = arith.constant 1 : index
    %c0_6 = arith.constant 0 : index
    %c0_7 = arith.constant 0 : index
    %5 = vector.load %arg0[%c1, %c0_6, %c0_7] : memref<2x8x256xf32, #tpu.memory_space<vmem>>, vector<1x8x256xf32>
    %6 = vector.shape_cast %5 : vector<1x8x256xf32> to vector<8x256xf32>
    %cst_8 = arith.constant dense<0.000000e+00> : vector<16x256xf32>
    %7 = tpu.matmul %0, %6, %cst_8 {dimension_numbers = #tpu.dot_dimension_numbers<[1], [0], [0], [1], [0, 0, 1, 1], [], []>} : vector<16x8xf32>, vector<8x256xf32>, vector<16x256xf32> -> vector<16x256xf32>
    %cst_9 = arith.constant dense<0.000000e+00> : vector<16xf32>
    %8 = vector.multi_reduction <add>, %4, %cst_9 [1] : vector<16x256xf32> to vector<16xf32>
    %9 = vector.shape_cast %8 : vector<16xf32> to vector<16x1xf32>
    %cst_10 = arith.constant 0.000000e+00 : f32
    %10 = vector.broadcast %cst_10 : f32 to vector<16x1xf32>
    %11 = arith.addf %10, %9 : vector<16x1xf32>
    %cst_11 = arith.constant dense<0.000000e+00> : vector<16xf32>
    %12 = vector.multi_reduction <add>, %7, %cst_11 [1] : vector<16x256xf32> to vector<16xf32>
    %13 = vector.shape_cast %12 : vector<16xf32> to vector<16x1xf32>
    %14 = arith.addf %11, %13 : vector<16x1xf32>
    %15 = arith.mulf %4, %4 : vector<16x256xf32>
    %cst_12 = arith.constant dense<0.000000e+00> : vector<16xf32>
    %16 = vector.multi_reduction <add>, %15, %cst_12 [1] : vector<16x256xf32> to vector<16xf32>
    %17 = vector.shape_cast %16 : vector<16xf32> to vector<16x1xf32>
    %cst_13 = arith.constant 0.000000e+00 : f32
    %18 = vector.broadcast %cst_13 : f32 to vector<16x1xf32>
    %19 = arith.addf %18, %17 : vector<16x1xf32>
    %20 = arith.mulf %7, %7 : vector<16x256xf32>
    %cst_14 = arith.constant dense<0.000000e+00> : vector<16xf32>
    %21 = vector.multi_reduction <add>, %20, %cst_14 [1] : vector<16x256xf32> to vector<16xf32>
    %22 = vector.shape_cast %21 : vector<16xf32> to vector<16x1xf32>
    %23 = arith.addf %19, %22 : vector<16x1xf32>
    %cst_15 = arith.constant 0.001953125 : f32
    %24 = vector.broadcast %cst_15 : f32 to vector<16x1xf32>
    %25 = arith.mulf %14, %24 : vector<16x1xf32>
    %cst_16 = arith.constant 0.001953125 : f32
    %26 = vector.broadcast %cst_16 : f32 to vector<16x1xf32>
    %27 = arith.mulf %23, %26 : vector<16x1xf32>
    %28 = arith.mulf %25, %25 : vector<16x1xf32>
    %29 = arith.subf %27, %28 : vector<16x1xf32>
    %cst_17 = arith.constant 0.000000e+00 : f32
    %30 = vector.broadcast %cst_17 : f32 to vector<16x1xf32>
    %31 = arith.maximumf %29, %30 : vector<16x1xf32>
    %c0_18 = arith.constant 0 : index
    %c0_19 = arith.constant 0 : index
    %32 = vector.load %arg2[%c0_18, %c0_19] : memref<16x1xf32, #tpu.memory_space<vmem>>, vector<16x1xf32>
    %cst_20 = arith.constant 9.99999974E-6 : f32
    %33 = vector.broadcast %cst_20 : f32 to vector<16x1xf32>
    %34 = arith.addf %31, %33 : vector<16x1xf32>
    %35 = math.rsqrt %34 : vector<16x1xf32>
    %36 = arith.mulf %32, %35 : vector<16x1xf32>
    %c0_21 = arith.constant 0 : index
    %c0_22 = arith.constant 0 : index
    %37 = vector.load %arg3[%c0_21, %c0_22] : memref<16x1xf32, #tpu.memory_space<vmem>>, vector<16x1xf32>
    %38 = arith.mulf %25, %36 : vector<16x1xf32>
    %39 = arith.subf %37, %38 : vector<16x1xf32>
    %40 = vector.broadcast %36 : vector<16x1xf32> to vector<16x256xf32>
    %41 = arith.mulf %4, %40 : vector<16x256xf32>
    %42 = vector.broadcast %39 : vector<16x1xf32> to vector<16x256xf32>
    %43 = arith.addf %41, %42 : vector<16x256xf32>
    %cst_23 = arith.constant 0.000000e+00 : f32
    %44 = vector.broadcast %cst_23 : f32 to vector<16x256xf32>
    %45 = arith.maximumf %43, %44 : vector<16x256xf32>
    %cst_24 = arith.constant dense<0.000000e+00> : vector<8x256xf32>
    %46 = tpu.matmul %1, %45, %cst_24 {dimension_numbers = #tpu.dot_dimension_numbers<[1], [0], [0], [1], [0, 0, 1, 1], [], []>} : vector<8x16xf32>, vector<16x256xf32>, vector<8x256xf32> -> vector<8x256xf32>
    %47 = vector.broadcast %36 : vector<16x1xf32> to vector<16x256xf32>
    %48 = arith.mulf %7, %47 : vector<16x256xf32>
    %49 = vector.broadcast %39 : vector<16x1xf32> to vector<16x256xf32>
    %50 = arith.addf %48, %49 : vector<16x256xf32>
    %cst_25 = arith.constant 0.000000e+00 : f32
    %51 = vector.broadcast %cst_25 : f32 to vector<16x256xf32>
    %52 = arith.maximumf %50, %51 : vector<16x256xf32>
    %cst_26 = arith.constant dense<0.000000e+00> : vector<8x256xf32>
    %53 = tpu.matmul %1, %52, %cst_26 {dimension_numbers = #tpu.dot_dimension_numbers<[1], [0], [0], [1], [0, 0, 1, 1], [], []>} : vector<8x16xf32>, vector<16x256xf32>, vector<8x256xf32> -> vector<8x256xf32>
    %cst_27 = arith.constant dense<0.000000e+00> : vector<8xf32>
    %54 = vector.multi_reduction <add>, %46, %cst_27 [1] : vector<8x256xf32> to vector<8xf32>
    %55 = vector.shape_cast %54 : vector<8xf32> to vector<8x1xf32>
    %cst_28 = arith.constant 0.000000e+00 : f32
    %56 = vector.broadcast %cst_28 : f32 to vector<8x1xf32>
    %57 = arith.addf %56, %55 : vector<8x1xf32>
    %cst_29 = arith.constant dense<0.000000e+00> : vector<8xf32>
    %58 = vector.multi_reduction <add>, %53, %cst_29 [1] : vector<8x256xf32> to vector<8xf32>
    %59 = vector.shape_cast %58 : vector<8xf32> to vector<8x1xf32>
    %60 = arith.addf %57, %59 : vector<8x1xf32>
    %61 = arith.mulf %46, %46 : vector<8x256xf32>
    %cst_30 = arith.constant dense<0.000000e+00> : vector<8xf32>
    %62 = vector.multi_reduction <add>, %61, %cst_30 [1] : vector<8x256xf32> to vector<8xf32>
    %63 = vector.shape_cast %62 : vector<8xf32> to vector<8x1xf32>
    %cst_31 = arith.constant 0.000000e+00 : f32
    %64 = vector.broadcast %cst_31 : f32 to vector<8x1xf32>
    %65 = arith.addf %64, %63 : vector<8x1xf32>
    %66 = arith.mulf %53, %53 : vector<8x256xf32>
    %cst_32 = arith.constant dense<0.000000e+00> : vector<8xf32>
    %67 = vector.multi_reduction <add>, %66, %cst_32 [1] : vector<8x256xf32> to vector<8xf32>
    %68 = vector.shape_cast %67 : vector<8xf32> to vector<8x1xf32>
    %69 = arith.addf %65, %68 : vector<8x1xf32>
    %cst_33 = arith.constant 0.001953125 : f32
    %70 = vector.broadcast %cst_33 : f32 to vector<8x1xf32>
    %71 = arith.mulf %60, %70 : vector<8x1xf32>
    %cst_34 = arith.constant 0.001953125 : f32
    %72 = vector.broadcast %cst_34 : f32 to vector<8x1xf32>
    %73 = arith.mulf %69, %72 : vector<8x1xf32>
    %74 = arith.mulf %71, %71 : vector<8x1xf32>
    %75 = arith.subf %73, %74 : vector<8x1xf32>
    %cst_35 = arith.constant 0.000000e+00 : f32
    %76 = vector.broadcast %cst_35 : f32 to vector<8x1xf32>
    %77 = arith.maximumf %75, %76 : vector<8x1xf32>
    %c0_36 = arith.constant 0 : index
    %c0_37 = arith.constant 0 : index
    %78 = vector.load %arg5[%c0_36, %c0_37] : memref<8x1xf32, #tpu.memory_space<vmem>>, vector<8x1xf32>
    %cst_38 = arith.constant 9.99999974E-6 : f32
    %79 = vector.broadcast %cst_38 : f32 to vector<8x1xf32>
    %80 = arith.addf %77, %79 : vector<8x1xf32>
    %81 = math.rsqrt %80 : vector<8x1xf32>
    %82 = arith.mulf %78, %81 : vector<8x1xf32>
    %c0_39 = arith.constant 0 : index
    %c0_40 = arith.constant 0 : index
    %83 = vector.load %arg6[%c0_39, %c0_40] : memref<8x1xf32, #tpu.memory_space<vmem>>, vector<8x1xf32>
    %84 = arith.mulf %71, %82 : vector<8x1xf32>
    %85 = arith.subf %83, %84 : vector<8x1xf32>
    %86 = vector.broadcast %82 : vector<8x1xf32> to vector<8x256xf32>
    %87 = arith.mulf %46, %86 : vector<8x256xf32>
    %88 = vector.broadcast %85 : vector<8x1xf32> to vector<8x256xf32>
    %89 = arith.addf %87, %88 : vector<8x256xf32>
    %cst_41 = arith.constant 0.000000e+00 : f32
    %90 = vector.broadcast %cst_41 : f32 to vector<8x256xf32>
    %91 = arith.maximumf %89, %90 : vector<8x256xf32>
    %c0_42 = arith.constant 0 : index
    %c0_43 = arith.constant 0 : index
    %c0_44 = arith.constant 0 : index
    %92 = vector.load %arg7[%c0_42, %c0_43, %c0_44] : memref<2x8x256xf32, #tpu.memory_space<vmem>>, vector<1x8x256xf32>
    %93 = vector.shape_cast %92 : vector<1x8x256xf32> to vector<8x256xf32>
    %94 = vector.shape_cast %91 : vector<8x256xf32> to vector<1x8x256xf32>
    tpu.vector_store %arg7[%c0_42, %c0_43, %c0_44], %94 {strides = array<i32>} : memref<2x8x256xf32, #tpu.memory_space<vmem>>, vector<1x8x256xf32>,
    %95 = vector.broadcast %82 : vector<8x1xf32> to vector<8x256xf32>
    %96 = arith.mulf %53, %95 : vector<8x256xf32>
    %97 = vector.broadcast %85 : vector<8x1xf32> to vector<8x256xf32>
    %98 = arith.addf %96, %97 : vector<8x256xf32>
    %cst_45 = arith.constant 0.000000e+00 : f32
    %99 = vector.broadcast %cst_45 : f32 to vector<8x256xf32>
    %100 = arith.maximumf %98, %99 : vector<8x256xf32>
    %c1_46 = arith.constant 1 : index
    %c0_47 = arith.constant 0 : index
    %c0_48 = arith.constant 0 : index
    %101 = vector.load %arg7[%c1_46, %c0_47, %c0_48] : memref<2x8x256xf32, #tpu.memory_space<vmem>>, vector<1x8x256xf32>
    %102 = vector.shape_cast %101 : vector<1x8x256xf32> to vector<8x256xf32>
    %103 = vector.shape_cast %100 : vector<8x256xf32> to vector<1x8x256xf32>
    tpu.vector_store %arg7[%c1_46, %c0_47, %c0_48], %103 {strides = array<i32>} : memref<2x8x256xf32, #tpu.memory_space<vmem>>, vector<1x8x256xf32>,
    return
  }
}

</mosaic_0001>

<llo_original>
// kernel: adapter4_forward.1
$region0: #{adapter4_forward.1}
  #allocation0 [shape = 'u32[]', space=smem, size = 0x4, offset = 0x4, fixed_abs, tag = 'smem constant byte address 0x4 - core index']
  #allocation1 [shape = 'u32[144,128]{1,0:T(1,128)}', space=vmem, size = 0x12000, scoped, tag = 'internal scratch']
  %s0 = inlined_call_operand.vmem [shape: f32[2,8,256], index: 0, kind: input, shape index: {}]
  %s1 = inlined_call_operand.vmem [shape: f32[16,8], index: 1, kind: input, shape index: {}]
  %s2 = inlined_call_operand.vmem [shape: f32[16,1], index: 2, kind: input, shape index: {}]
  %s3 = inlined_call_operand.vmem [shape: f32[16,1], index: 3, kind: input, shape index: {}]
  %s4 = inlined_call_operand.vmem [shape: f32[8,16], index: 4, kind: input, shape index: {}]
  %s5 = inlined_call_operand.vmem [shape: f32[8,1], index: 5, kind: input, shape index: {}]
  %s6 = inlined_call_operand.vmem [shape: f32[8,1], index: 6, kind: input, shape index: {}]
  %s7 = inlined_call_operand.vmem [shape: f32[2,8,256], index: 7, kind: output, shape index: {}]
  %s8 = sld [smem:[#allocation0]]
  $region38: #{adapter4_forward.1} parent=0
    _
  %s10 = ssub.s32 1, %s8
  %s11 = scalar_select 0, %s10, %s8
  // Predicated region
  $region2: #{adapter4_forward.1} parent=0 // pred_check
    _
  $region3: #{adapter4_forward.1} parent=0 // pred_check_branch
    %13 = sbr.rel (0) target = $region5
  $region4: #{adapter4_forward.1} parent=0 // pred_region
    _
  $region5: #{adapter4_forward.1} parent=0 // pred_fallthru
    _
  // Predicated region
  $region6: #{adapter4_forward.1} parent=0 // pred_check
    _
  $region7: #{adapter4_forward.1} parent=0 // pred_check_branch
    %15 = sbr.rel (0) target = $region9
  $region8: #{adapter4_forward.1} parent=0 // pred_region
    _
  $region9: #{adapter4_forward.1} parent=0 // pred_fallthru
    _
  // Predicated region
  $region10: #{adapter4_forward.1} parent=0 // pred_check
    _
  $region11: #{adapter4_forward.1} parent=0 // pred_check_branch
    %17 = sbr.rel (0) target = $region13
  $region12: #{adapter4_forward.1} parent=0 // pred_region
    _
  $region13: #{adapter4_forward.1} parent=0 // pred_fallthru
    _
  // Predicated region
  $region14: #{adapter4_forward.1} parent=0 // pred_check
    _
  $region15: #{adapter4_forward.1} parent=0 // pred_check_branch
    %19 = sbr.rel (0) target = $region17
  $region16: #{adapter4_forward.1} parent=0 // pred_region
    _
  $region17: #{adapter4_forward.1} parent=0 // pred_fallthru
    _
  // Predicated region
  $region18: #{adapter4_forward.1} parent=0 // pred_check
    _
  $region19: #{adapter4_forward.1} parent=0 // pred_check_branch
    %21 = sbr.rel (0) target = $region21
  $region20: #{adapter4_forward.1} parent=0 // pred_region
    _
  $region21: #{adapter4_forward.1} parent=0 // pred_fallthru
    _
  // Predicated region
  $region22: #{adapter4_forward.1} parent=0 // pred_check
    _
  $region23: #{adapter4_forward.1} parent=0 // pred_check_branch
    %23 = sbr.rel (0) target = $region25
  $region24: #{adapter4_forward.1} parent=0 // pred_region
    _
  $region25: #{adapter4_forward.1} parent=0 // pred_fallthru
    _
  // Predicated region
  $region26: #{adapter4_forward.1} parent=0 // pred_check
    _
  $region27: #{adapter4_forward.1} parent=0 // pred_check_branch
    %25 = sbr.rel (0) target = $region29
  $region28: #{adapter4_forward.1} parent=0 // pred_region
    _
  $region29: #{adapter4_forward.1} parent=0 // pred_fallthru
    _
  %v26 = vld [vmem:[%s1] sm:$0xff]
  %v27 = vld [vmem:[%s1 + $0x8] sm:$0xff]
  %v28 = vld [vmem:[%s4] sm:$0xff]
  %v29 = vld [vmem:[%s0] sm:$0xff]
  %v30 = vld [vmem:[%s0 + $0x8] sm:$0xff]
  %vm31 = vcmask 64512
  %v33 = vsel %vm31, %v26, 0
  %v36 = vsel %vm31, %v27, 0
  %38 = vmatprep.subr.mxu0 0.0
  %39 = vmatpush1.msra.mxu0 0.0
  %40 = vmatprep.subr.mxu0 0.0
  %41 = vmatpush1.msra.mxu0 0.0
  %42 = vmatprep.subr.mxu0 0.0
  %43 = vmatpush1.msra.mxu0 0.0
  %44 = vmatprep.subr.mxu0 0.0
  %45 = vmatpush1.msra.mxu0 0.0
  %46 = vmatprep.subr.mxu0 0.0
  %47 = vmatpush1.msra.mxu0 0.0
  %48 = vmatprep.subr.mxu0 0.0
  %49 = vmatpush1.msra.mxu0 0.0
  %50 = vmatprep.subr.mxu0 0.0
  %51 = vmatpush1.msra.mxu0 0.0
  %52 = vmatprep.subr.mxu0 0.0
  %53 = vmatpush1.msra.mxu0 0.0
  %54 = vmatprep.subr.mxu0 0.0
  %55 = vmatpush1.msra.mxu0 0.0
  %56 = vmatprep.subr.mxu0 0.0
  %57 = vmatpush1.msra.mxu0 0.0
  %58 = vmatprep.subr.mxu0 0.0
  %59 = vmatpush1.msra.mxu0 0.0
  %60 = vmatprep.subr.mxu0 0.0
  %61 = vmatpush1.msra.mxu0 0.0
  %62 = vmatprep.subr.mxu0 0.0
  %63 = vmatpush1.msra.mxu0 0.0
  %64 = vmatprep.subr.mxu0 0.0
  %65 = vmatpush1.msra.mxu0 0.0
  %66 = vmatprep.subr.mxu0 0.0
  %67 = vmatpush1.msra.mxu0 0.0
  %68 = vmatprep.subr.mxu0 %v30
  %69 = vmatpush1.msra.mxu0 %v29
  %70 = vmatprep.subr.mxu0 0.0
  %71 = vmatpush2.msra.mxu0 0.0
  %72 = vmatprep.subr.mxu0 0.0
  %73 = vmatpush2.msra.mxu0 0.0
  %74 = vmatprep.subr.mxu0 0.0
  %75 = vmatpush2.msra.mxu0 0.0
  %76 = vmatprep.subr.mxu0 0.0
  %77 = vmatpush2.msra.mxu0 0.0
  %78 = vmatprep.subr.mxu0 0.0
  %79 = vmatpush2.msra.mxu0 0.0
  %80 = vmatprep.subr.mxu0 0.0
  %81 = vmatpush2.msra.mxu0 0.0
  %82 = vmatprep.subr.mxu0 0.0
  %83 = vmatpush2.msra.mxu0 0.0
  %84 = vmatprep.subr.mxu0 0.0
  %85 = vmatpush2.msra.mxu0 0.0
  %86 = vmatprep.subr.mxu0 0.0
  %87 = vmatpush2.msra.mxu0 0.0
  %88 = vmatprep.subr.mxu0 0.0
  %89 = vmatpush2.msra.mxu0 0.0
  %90 = vmatprep.subr.mxu0 0.0
  %91 = vmatpush2.msra.mxu0 0.0
  %92 = vmatprep.subr.mxu0 0.0
  %93 = vmatpush2.msra.mxu0 0.0
  %94 = vmatprep.subr.mxu0 0.0
  %95 = vmatpush2.msra.mxu0 0.0
  %96 = vmatprep.subr.mxu0 0.0
  %97 = vmatpush2.msra.mxu0 0.0
  %98 = vmatprep.subr.mxu0 0.0
  %99 = vmatpush2.msra.mxu0 0.0
  %100 = vmatprep.subr.mxu0 0.0
  %101 = vmatpush2.msra.mxu0 0.0
  %102 = vmatprep.mubr.f32.mxu0 0.0
  %103 = vmatmul.mubr.f32.gmra.mxu0 %v33
  %v104 = vpop.f32.mrf.mxu0
  %v105 = vadd.f32 0.0, %v104
  %v106 = vpop.f32.mrf.mxu0
  %v107 = vadd.f32 0.0, %v106
  %108 = vmatprep.mubr.f32.mxu0 0.0
  %109 = vmatmul.mubr.f32.gmra.mxu0 %v36
  %v110 = vpop.f32.mrf.mxu0
  %v111 = vadd.f32 0.0, %v110
  %v112 = vpop.f32.mrf.mxu0
  %v113 = vadd.f32 0.0, %v112
  %114 = vdwg.mxu0
  %s115 = scalar_lea.vmem %s0, 16
  %v116 = vld [vmem:[%s115] sm:$0xff]
  %v117 = vld [vmem:[%s115 + $0x8] sm:$0xff]
  %118 = vmatprep.subr.mxu0 0.0
  %119 = vmatpush1.msra.mxu0 0.0
  %120 = vmatprep.subr.mxu0 0.0
  %121 = vmatpush1.msra.mxu0 0.0
  %122 = vmatprep.subr.mxu0 0.0
  %123 = vmatpush1.msra.mxu0 0.0
  %124 = vmatprep.subr.mxu0 0.0
  %125 = vmatpush1.msra.mxu0 0.0
  %126 = vmatprep.subr.mxu0 0.0
  %127 = vmatpush1.msra.mxu0 0.0
  %128 = vmatprep.subr.mxu0 0.0
  %129 = vmatpush1.msra.mxu0 0.0
  %130 = vmatprep.subr.mxu0 0.0
  %131 = vmatpush1.msra.mxu0 0.0
  %132 = vmatprep.subr.mxu0 0.0
  %133 = vmatpush1.msra.mxu0 0.0
  %134 = vmatprep.subr.mxu0 0.0
  %135 = vmatpush1.msra.mxu0 0.0
  %136 = vmatprep.subr.mxu0 0.0
  %137 = vmatpush1.msra.mxu0 0.0
  %138 = vmatprep.subr.mxu0 0.0
  %139 = vmatpush1.msra.mxu0 0.0
  %140 = vmatprep.subr.mxu0 0.0
  %141 = vmatpush1.msra.mxu0 0.0
  %142 = vmatprep.subr.mxu0 0.0
  %143 = vmatpush1.msra.mxu0 0.0
  %144 = vmatprep.subr.mxu0 0.0
  %145 = vmatpush1.msra.mxu0 0.0
  %146 = vmatprep.subr.mxu0 0.0
  %147 = vmatpush1.msra.mxu0 0.0
  %148 = vmatprep.subr.mxu0 %v117
  %149 = vmatpush1.msra.mxu0 %v116
  %150 = vmatprep.subr.mxu0 0.0
  %151 = vmatpush2.msra.mxu0 0.0
  %152 = vmatprep.subr.mxu0 0.0
  %153 = vmatpush2.msra.mxu0 0.0
  %154 = vmatprep.subr.mxu0 0.0
  %155 = vmatpush2.msra.mxu0 0.0
  %156 = vmatprep.subr.mxu0 0.0
  %157 = vmatpush2.msra.mxu0 0.0
  %158 = vmatprep.subr.mxu0 0.0
  %159 = vmatpush2.msra.mxu0 0.0
  %160 = vmatprep.subr.mxu0 0.0
  %161 = vmatpush2.msra.mxu0 0.0
  %162 = vmatprep.subr.mxu0 0.0
  %163 = vmatpush2.msra.mxu0 0.0
  %164 = vmatprep.subr.mxu0 0.0
  %165 = vmatpush2.msra.mxu0 0.0
  %166 = vmatprep.subr.mxu0 0.0
  %167 = vmatpush2.msra.mxu0 0.0
  %168 = vmatprep.subr.mxu0 0.0
  %169 = vmatpush2.msra.mxu0 0.0
  %170 = vmatprep.subr.mxu0 0.0
  %171 = vmatpush2.msra.mxu0 0.0
  %172 = vmatprep.subr.mxu0 0.0
  %173 = vmatpush2.msra.mxu0 0.0
  %174 = vmatprep.subr.mxu0 0.0
  %175 = vmatpush2.msra.mxu0 0.0
  %176 = vmatprep.subr.mxu0 0.0
  %177 = vmatpush2.msra.mxu0 0.0
  %178 = vmatprep.subr.mxu0 0.0
  %179 = vmatpush2.msra.mxu0 0.0
  %180 = vmatprep.subr.mxu0 0.0
  %181 = vmatpush2.msra.mxu0 0.0
  %182 = vmatprep.mubr.f32.mxu0 0.0
  %183 = vmatmul.mubr.f32.gmra.mxu0 %v33
  %v184 = vpop.f32.mrf.mxu0
  %v185 = vadd.f32 0.0, %v184
  %v186 = vpop.f32.mrf.mxu0
  %v187 = vadd.f32 0.0, %v186
  %188 = vmatprep.mubr.f32.mxu0 0.0
  %189 = vmatmul.mubr.f32.gmra.mxu0 %v36
  %v190 = vpop.f32.mrf.mxu0
  %v191 = vadd.f32 0.0, %v190
  %v192 = vpop.f32.mrf.mxu0
  %v193 = vadd.f32 0.0, %v192
  %194 = vdwg.mxu0
  %v195 = vadd.f32 %v105, %v107
  %196 = vadd.xlane.f32.xlu0 %v195
  %v197 = vpop.xlane.xlu0 %196
  %v198 = vadd.f32 %v111, %v113
  %199 = vadd.xlane.f32.xlu0 %v198
  %v200 = vpop.xlane.xlu0 %199
  %v201 = vadd.f32 %v197, 0.0
  %v202 = vadd.f32 %v200, 0.0
  %v203 = vadd.f32 %v185, %v187
  %204 = vadd.xlane.f32.xlu0 %v203
  %v205 = vpop.xlane.xlu0 %204
  %v206 = vadd.f32 %v191, %v193
  %207 = vadd.xlane.f32.xlu0 %v206
  %v208 = vpop.xlane.xlu0 %207
  %v209 = vadd.f32 %v201, %v205
  %v210 = vadd.f32 %v202, %v208
  %v211 = vmul.f32 %v105, %v105
  %v212 = vmul.f32 %v107, %v107
  %v213 = vmul.f32 %v111, %v111
  %v214 = vmul.f32 %v113, %v113
  %v215 = vadd.f32 %v211, %v212
  %216 = vadd.xlane.f32.xlu0 %v215
  %v217 = vpop.xlane.xlu0 %216
  %v218 = vadd.f32 %v213, %v214
  %219 = vadd.xlane.f32.xlu0 %v218
  %v220 = vpop.xlane.xlu0 %219
  %v221 = vadd.f32 %v217, 0.0
  %v222 = vadd.f32 %v220, 0.0
  %v223 = vmul.f32 %v185, %v185
  %v224 = vmul.f32 %v187, %v187
  %v225 = vmul.f32 %v191, %v191
  %v226 = vmul.f32 %v193, %v193
  %v227 = vadd.f32 %v223, %v224
  %228 = vadd.xlane.f32.xlu0 %v227
  %v229 = vpop.xlane.xlu0 %228
  %v230 = vadd.f32 %v225, %v226
  %231 = vadd.xlane.f32.xlu0 %v230
  %v232 = vpop.xlane.xlu0 %231
  %v233 = vadd.f32 %v221, %v229
  %v234 = vadd.f32 %v222, %v232
  %v235 = vmul.f32 %v209, 0.001953125
  %v236 = vmul.f32 %v210, 0.001953125
  %v237 = vmul.f32 %v233, 0.001953125
  %v238 = vmul.f32 %v234, 0.001953125
  %v239 = vmul.f32 %v235, %v235
  %v240 = vmul.f32 %v236, %v236
  %v241 = vsub.f32 %v237, %v239
  %v242 = vsub.f32 %v238, %v240
  %v243 = vmax.f32 %v241, 0.0
  %v244 = vmax.f32 %v242, 0.0
  %v245 = vld [vmem:[%s2] sm:$0xff]
  %v246 = vld [vmem:[%s2 + $0x8] sm:$0xff]
  %v247 = vadd.f32 %v243, 1e-05
  %v248 = vadd.f32 %v244, 1e-05
  %v249 = vrsqrt.pop %v247
  %v250 = vrsqrt.pop %v248
  %v251 = vmul.f32 %v245, %v249
  %v252 = vmul.f32 %v246, %v250
  %v253 = vld [vmem:[%s3] sm:$0xff]
  %v254 = vld [vmem:[%s3 + $0x8] sm:$0xff]
  %v255 = vmul.f32 %v235, %v251
  %v256 = vmul.f32 %v236, %v252
  %v257 = vsub.f32 %v253, %v255
  %v258 = vsub.f32 %v254, %v256
  %260 = vset.pattern.permute.xlu0 0
  %261 = vperm.xlu0 %260, %v251
  %v262 = vpop.permute.xlu0 %261
  %265 = vset.pattern.permute.xlu0 0
  %266 = vperm.xlu0 %265, %v252
  %v267 = vpop.permute.xlu0 %266
  %v269 = vmul.f32 %v105, %v262
  %v270 = vmul.f32 %v107, %v262
  %v271 = vmul.f32 %v111, %v267
  %v272 = vmul.f32 %v113, %v267
  %274 = vset.pattern.permute.xlu0 0
  %275 = vperm.xlu0 %274, %v257
  %v276 = vpop.permute.xlu0 %275
  %279 = vset.pattern.permute.xlu0 0
  %280 = vperm.xlu0 %279, %v258
  %v281 = vpop.permute.xlu0 %280
  %v283 = vadd.f32 %v269, %v276
  %v284 = vadd.f32 %v270, %v276
  %v285 = vadd.f32 %v271, %v281
  %v286 = vadd.f32 %v272, %v281
  %v287 = vmax.f32 %v283, 0.0
  %v288 = vmax.f32 %v284, 0.0
  %v289 = vmax.f32 %v285, 0.0
  %v290 = vmax.f32 %v286, 0.0
  %vm291 = vcmask 130048
  %v293 = vsel %vm291, %v28, 0
  %295 = vmatprep.subr.mxu0 0.0
  %296 = vmatpush1.msra.mxu0 0.0
  %297 = vmatprep.subr.mxu0 0.0
  %298 = vmatpush1.msra.mxu0 0.0
  %299 = vmatprep.subr.mxu0 0.0
  %300 = vmatpush1.msra.mxu0 0.0
  %301 = vmatprep.subr.mxu0 0.0
  %302 = vmatpush1.msra.mxu0 0.0
  %303 = vmatprep.subr.mxu0 0.0
  %304 = vmatpush1.msra.mxu0 0.0
  %305 = vmatprep.subr.mxu0 0.0
  %306 = vmatpush1.msra.mxu0 0.0
  %307 = vmatprep.subr.mxu0 0.0
  %308 = vmatpush1.msra.mxu0 0.0
  %309 = vmatprep.subr.mxu0 0.0
  %310 = vmatpush1.msra.mxu0 0.0
  %311 = vmatprep.subr.mxu0 0.0
  %312 = vmatpush1.msra.mxu0 0.0
  %313 = vmatprep.subr.mxu0 0.0
  %314 = vmatpush1.msra.mxu0 0.0
  %315 = vmatprep.subr.mxu0 0.0
  %316 = vmatpush1.msra.mxu0 0.0
  %317 = vmatprep.subr.mxu0 0.0
  %318 = vmatpush1.msra.mxu0 0.0
  %319 = vmatprep.subr.mxu0 0.0
  %320 = vmatpush1.msra.mxu0 0.0
  %321 = vmatprep.subr.mxu0 0.0
  %322 = vmatpush1.msra.mxu0 0.0
  %323 = vmatprep.subr.mxu0 %v290
  %324 = vmatpush1.msra.mxu0 %v289
  %325 = vmatprep.subr.mxu0 %v288
  %326 = vmatpush1.msra.mxu0 %v287
  %327 = vmatprep.subr.mxu0 0.0
  %328 = vmatpush2.msra.mxu0 0.0
  %329 = vmatprep.subr.mxu0 0.0
  %330 = vmatpush2.msra.mxu0 0.0
  %331 = vmatprep.subr.mxu0 0.0
  %332 = vmatpush2.msra.mxu0 0.0
  %333 = vmatprep.subr.mxu0 0.0
  %334 = vmatpush2.msra.mxu0 0.0
  %335 = vmatprep.subr.mxu0 0.0
  %336 = vmatpush2.msra.mxu0 0.0
  %337 = vmatprep.subr.mxu0 0.0
  %338 = vmatpush2.msra.mxu0 0.0
  %339 = vmatprep.subr.mxu0 0.0
  %340 = vmatpush2.msra.mxu0 0.0
  %341 = vmatprep.subr.mxu0 0.0
  %342 = vmatpush2.msra.mxu0 0.0
  %343 = vmatprep.subr.mxu0 0.0
  %344 = vmatpush2.msra.mxu0 0.0
  %345 = vmatprep.subr.mxu0 0.0
  %346 = vmatpush2.msra.mxu0 0.0
  %347 = vmatprep.subr.mxu0 0.0
  %348 = vmatpush2.msra.mxu0 0.0
  %349 = vmatprep.subr.mxu0 0.0
  %350 = vmatpush2.msra.mxu0 0.0
  %351 = vmatprep.subr.mxu0 0.0
  %352 = vmatpush2.msra.mxu0 0.0
  %353 = vmatprep.subr.mxu0 0.0
  %354 = vmatpush2.msra.mxu0 0.0
  %355 = vmatprep.subr.mxu0 0.0
  %356 = vmatpush2.msra.mxu0 0.0
  %357 = vmatprep.subr.mxu0 0.0
  %358 = vmatpush2.msra.mxu0 0.0
  %359 = vmatprep.mubr.f32.mxu0 0.0
  %360 = vmatmul.mubr.f32.gmra.mxu0 %v293
  %v361 = vpop.f32.mrf.mxu0
  %v362 = vadd.f32 0.0, %v361
  %v363 = vpop.f32.mrf.mxu0
  %v364 = vadd.f32 0.0, %v363
  %365 = vdwg.mxu0
  %v366 = vmul.f32 %v185, %v262
  %v367 = vmul.f32 %v187, %v262
  %v368 = vmul.f32 %v191, %v267
  %v369 = vmul.f32 %v193, %v267
  %v370 = vadd.f32 %v366, %v276
  %v371 = vadd.f32 %v367, %v276
  %v372 = vadd.f32 %v368, %v281
  %v373 = vadd.f32 %v369, %v281
  %v374 = vmax.f32 %v370, 0.0
  %v375 = vmax.f32 %v371, 0.0
  %v376 = vmax.f32 %v372, 0.0
  %v377 = vmax.f32 %v373, 0.0
  %378 = vmatprep.subr.mxu0 0.0
  %379 = vmatpush1.msra.mxu0 0.0
  %380 = vmatprep.subr.mxu0 0.0
  %381 = vmatpush1.msra.mxu0 0.0
  %382 = vmatprep.subr.mxu0 0.0
  %383 = vmatpush1.msra.mxu0 0.0
  %384 = vmatprep.subr.mxu0 0.0
  %385 = vmatpush1.msra.mxu0 0.0
  %386 = vmatprep.subr.mxu0 0.0
  %387 = vmatpush1.msra.mxu0 0.0
  %388 = vmatprep.subr.mxu0 0.0
  %389 = vmatpush1.msra.mxu0 0.0
  %390 = vmatprep.subr.mxu0 0.0
  %391 = vmatpush1.msra.mxu0 0.0
  %392 = vmatprep.subr.mxu0 0.0
  %393 = vmatpush1.msra.mxu0 0.0
  %394 = vmatprep.subr.mxu0 0.0
  %395 = vmatpush1.msra.mxu0 0.0
  %396 = vmatprep.subr.mxu0 0.0
  %397 = vmatpush1.msra.mxu0 0.0
  %398 = vmatprep.subr.mxu0 0.0
  %399 = vmatpush1.msra.mxu0 0.0
  %400 = vmatprep.subr.mxu0 0.0
  %401 = vmatpush1.msra.mxu0 0.0
  %402 = vmatprep.subr.mxu0 0.0
  %403 = vmatpush1.msra.mxu0 0.0
  %404 = vmatprep.subr.mxu0 0.0
  %405 = vmatpush1.msra.mxu0 0.0
  %406 = vmatprep.subr.mxu0 %v377
  %407 = vmatpush1.msra.mxu0 %v376
  %408 = vmatprep.subr.mxu0 %v375
  %409 = vmatpush1.msra.mxu0 %v374
  %410 = vmatprep.subr.mxu0 0.0
  %411 = vmatpush2.msra.mxu0 0.0
  %412 = vmatprep.subr.mxu0 0.0
  %413 = vmatpush2.msra.mxu0 0.0
  %414 = vmatprep.subr.mxu0 0.0
  %415 = vmatpush2.msra.mxu0 0.0
  %416 = vmatprep.subr.mxu0 0.0
  %417 = vmatpush2.msra.mxu0 0.0
  %418 = vmatprep.subr.mxu0 0.0
  %419 = vmatpush2.msra.mxu0 0.0
  %420 = vmatprep.subr.mxu0 0.0
  %421 = vmatpush2.msra.mxu0 0.0
  %422 = vmatprep.subr.mxu0 0.0
  %423 = vmatpush2.msra.mxu0 0.0
  %424 = vmatprep.subr.mxu0 0.0
  %425 = vmatpush2.msra.mxu0 0.0
  %426 = vmatprep.subr.mxu0 0.0
  %427 = vmatpush2.msra.mxu0 0.0
  %428 = vmatprep.subr.mxu0 0.0
  %429 = vmatpush2.msra.mxu0 0.0
  %430 = vmatprep.subr.mxu0 0.0
  %431 = vmatpush2.msra.mxu0 0.0
  %432 = vmatprep.subr.mxu0 0.0
  %433 = vmatpush2.msra.mxu0 0.0
  %434 = vmatprep.subr.mxu0 0.0
  %435 = vmatpush2.msra.mxu0 0.0
  %436 = vmatprep.subr.mxu0 0.0
  %437 = vmatpush2.msra.mxu0 0.0
  %438 = vmatprep.subr.mxu0 0.0
  %439 = vmatpush2.msra.mxu0 0.0
  %440 = vmatprep.subr.mxu0 0.0
  %441 = vmatpush2.msra.mxu0 0.0
  %442 = vmatprep.mubr.f32.mxu0 0.0
  %443 = vmatmul.mubr.f32.gmra.mxu0 %v293
  %v444 = vpop.f32.mrf.mxu0
  %v445 = vadd.f32 0.0, %v444
  %v446 = vpop.f32.mrf.mxu0
  %v447 = vadd.f32 0.0, %v446
  %448 = vdwg.mxu0
  %v449 = vadd.f32 %v362, %v364
  %450 = vadd.xlane.f32.xlu0 %v449
  %v451 = vpop.xlane.xlu0 %450
  %v452 = vadd.f32 %v451, 0.0
  %v453 = vadd.f32 %v445, %v447
  %454 = vadd.xlane.f32.xlu0 %v453
  %v455 = vpop.xlane.xlu0 %454
  %v456 = vadd.f32 %v452, %v455
  %v457 = vmul.f32 %v362, %v362
  %v458 = vmul.f32 %v364, %v364
  %v459 = vadd.f32 %v457, %v458
  %460 = vadd.xlane.f32.xlu0 %v459
  %v461 = vpop.xlane.xlu0 %460
  %v462 = vadd.f32 %v461, 0.0
  %v463 = vmul.f32 %v445, %v445
  %v464 = vmul.f32 %v447, %v447
  %v465 = vadd.f32 %v463, %v464
  %466 = vadd.xlane.f32.xlu0 %v465
  %v467 = vpop.xlane.xlu0 %466
  %v468 = vadd.f32 %v462, %v467
  %v469 = vmul.f32 %v456, 0.001953125
  %v470 = vmul.f32 %v468, 0.001953125
  %v471 = vmul.f32 %v469, %v469
  %v472 = vsub.f32 %v470, %v471
  %v473 = vmax.f32 %v472, 0.0
  %v474 = vld [vmem:[%s5] sm:$0xff]
  %v475 = vadd.f32 %v473, 1e-05
  %v476 = vrsqrt.pop %v475
  %v477 = vmul.f32 %v474, %v476
  %v478 = vld [vmem:[%s6] sm:$0xff]
  %v479 = vmul.f32 %v469, %v477
  %v480 = vsub.f32 %v478, %v479
  %482 = vset.pattern.permute.xlu0 0
  %483 = vperm.xlu0 %482, %v477
  %v484 = vpop.permute.xlu0 %483
  %v486 = vmul.f32 %v362, %v484
  %v487 = vmul.f32 %v364, %v484
  %489 = vset.pattern.permute.xlu0 0
  %490 = vperm.xlu0 %489, %v480
  %v491 = vpop.permute.xlu0 %490
  %v493 = vadd.f32 %v486, %v491
  %v494 = vadd.f32 %v487, %v491
  %v495 = vmax.f32 %v493, 0.0
  %v496 = vmax.f32 %v494, 0.0
  %497 = vst [vmem:[%s7] sm:$0xff] %v495
  %498 = vst [vmem:[%s7 + $0x8] sm:$0xff] %v496
  %v499 = vmul.f32 %v445, %v484
  %v500 = vmul.f32 %v447, %v484
  %v501 = vadd.f32 %v499, %v491
  %v502 = vadd.f32 %v500, %v491
  %v503 = vmax.f32 %v501, 0.0
  %v504 = vmax.f32 %v502, 0.0
  %s505 = scalar_lea.vmem %s7, 16
  %506 = vst [vmem:[%s505] sm:$0xff] %v503
  %507 = vst [vmem:[%s505 + $0x8] sm:$0xff] %v504
  // Predicated region
  $region30: #{adapter4_forward.1} parent=0 // pred_check
    _
  $region31: #{adapter4_forward.1} parent=0 // pred_check_branch
    %509 = sbr.rel (0) target = $region33
  $region32: #{adapter4_forward.1} parent=0 // pred_region
    _
  $region33: #{adapter4_forward.1} parent=0 // pred_fallthru
    _
  // Predicated region
  $region34: #{adapter4_forward.1} parent=0 // pred_check
    _
  $region35: #{adapter4_forward.1} parent=0 // pred_check_branch
    %511 = sbr.rel (0) target = $region37
  $region36: #{adapter4_forward.1} parent=0 // pred_region
    _
  $region37: #{adapter4_forward.1} parent=0 // pred_fallthru
    _

</llo_original>
